<compile_context>
chip_gen: v7x
topology: tpu7x:2x2x1
jax: 0.10.0
libtpu: 0.0.40
codegen_flags: <defaults>
</compile_context>

<pallas_src>
import functools

import jax
import jax.numpy as jnp
from jax.experimental import pallas as pl
from jax.experimental.pallas import tpu as pltpu


def autopad(k, p=None, d=1):
    """Pad to 'same' shape outputs (mirror of the PyTorch helper)."""
    if d > 1:
        k = d * (k - 1) + 1 if isinstance(k, int) else [d * (x - 1) + 1 for x in k]
    if p is None:
        p = k // 2 if isinstance(k, int) else [x // 2 for x in k]
    return p


def _round_up(x, m):
    return (x + m - 1) // m * m


def _matmul_bias_silu_kernel(lhs_ref, w_ref, bias_ref, o_ref):
    """One (row_tile, c2_tile) output tile.

    lhs_ref : (tr, K*K*C1)  im2col activation tile (operand dtype)
    w_ref   : (K*K*C1, tc2) conv weights with BN scale folded in
    bias_ref: (1, tc2)      folded BN bias (f32)
    o_ref   : (tr, tc2)     output tile
    """
    # Single MXU matmul per tile, f32 accumulation (no big live accumulator,
    # no tap loop, no in-kernel strided slices).
    acc = jnp.dot(lhs_ref[...], w_ref[...], preferred_element_type=jnp.float32)
    y = acc + bias_ref[...]
    # SiLU epilogue (f32 elementwise; EUP handles the sigmoid exp).
    o_ref[...] = (y * jax.nn.sigmoid(y)).astype(o_ref.dtype)


def conv_bn_silu(x_nchw, weight, gamma, beta, running_mean, running_var,
                 *, k=3, s=1, p=None, d=1, eps=1e-5,
                 row_tile=256, c2_tile=128):
    """Equivalent of Conv.forward(x) with eval-mode BatchNorm (running stats).

    x_nchw : (N, C1, H, W)      weight : (C2, C1, k, k)  (groups=1, bias=False)
    """
    C2, C1w, K, K2 = weight.shape
    assert K == k and K2 == k
    N, C1, H, W = x_nchw.shape
    assert C1 == C1w, "grouped conv (g>1) not supported"  # TODO(synk): groups>1
    # TODO(synk): training-mode BatchNorm (batch statistics) not implemented;
    # eval-mode (running stats) semantics are used (standard fused conv-bn).

    pad = autopad(k, p, d)
    k_eff = d * (k - 1) + 1
    Ho = (H + 2 * pad - k_eff) // s + 1
    Wo = (W + 2 * pad - k_eff) // s + 1

    # ---- wrapper-side layout prep (plain XLA ops) -------------------------
    # TODO(synk): a multi-layer pipeline should keep activations NHWC
    # end-to-end to avoid these per-layer NCHW<->NHWC transposes.
    x_nhwc = jnp.transpose(x_nchw, (0, 2, 3, 1))
    xp = jnp.pad(x_nhwc, ((0, 0), (pad, pad), (pad, pad), (0, 0)))

    # im2col: gather the K*K taps into the lane (channel) axis.  This turns the
    # conv into ONE matmul with contraction K*K*C1 (vs K*K tiny matmuls over
    # strided in-kernel slices), which is both MXU-friendlier for small C1 and
    # removes all in-kernel vld/vst copy traffic.
    taps = []
    for ky in range(K):
        for kx in range(K):
            taps.append(
                xp[:, ky * d: ky * d + s * (Ho - 1) + 1: s,
                      kx * d: kx * d + s * (Wo - 1) + 1: s, :])
    cols = jnp.concatenate(taps, axis=-1)                 # (N, Ho, Wo, K*K*C1)
    KKC1 = K * K * C1
    R = N * Ho * Wo
    lhs = cols.reshape(R, KKC1)

    # Fold BatchNorm into the conv weights (scale) and a bias vector.
    scale = gamma / jnp.sqrt(running_var + eps)           # (C2,)
    bias = beta - running_mean * scale                    # (C2,)
    # (C2, C1, K, K) -> (K, K, C1, C2) -> (K*K*C1, C2), per-out-channel scaled.
    w2 = jnp.transpose(weight, (2, 3, 1, 0)).reshape(KKC1, C2) * scale[None, :]

    # Operand dtype follows the activations (pass bf16 on v6e/v7x for peak MXU
    # throughput and halved DMA); accumulation stays f32 inside the kernel.
    op_dtype = x_nchw.dtype
    lhs = lhs.astype(op_dtype)
    w2 = w2.astype(op_dtype)
    bias2 = bias.reshape(1, C2).astype(jnp.float32)

    # ---- tiling ------------------------------------------------------------
    # Output-channel tiling: lane-dense (multiple of 128) whenever C2 allows.
    if C2 % 128 == 0:
        C2p, tc2 = C2, min(c2_tile, C2)
    elif C2 > 128:
        C2p, tc2 = _round_up(C2, 128), 128
    else:
        # Small C2: keep the true channel count (masked stores) instead of
        # padding to 128 lanes, which would inflate HBM writeback by 128/C2.
        C2p, tc2 = C2, C2

    # Row tiling: multiples of the sublane count; 256 rows feeds the MXU well
    # and keeps (double-buffered input + output tile) far under VMEM on all of
    # v5e / v6e / v7x.
    tr = row_tile if R >= row_tile else _round_up(R, 8)
    Rp = _round_up(R, tr)

    if Rp != R:
        lhs = jnp.pad(lhs, ((0, Rp - R), (0, 0)))
    if C2p != C2:
        w2 = jnp.pad(w2, ((0, 0), (0, C2p - C2)))
        bias2 = jnp.pad(bias2, ((0, 0), (0, C2p - C2)))

    grid = (Rp // tr, C2p // tc2)

    itemsize = jnp.dtype(op_dtype).itemsize
    cost = pl.CostEstimate(
        flops=2 * Rp * KKC1 * C2p,
        transcendentals=Rp * C2p,
        bytes_accessed=(lhs.size * itemsize + w2.size * itemsize
                        + bias2.size * 4 + Rp * C2p * 4),
    )

    out_flat = pl.pallas_call(
        _matmul_bias_silu_kernel,
        out_shape=jax.ShapeDtypeStruct((Rp, C2p), jnp.float32),
        grid=grid,
        in_specs=[
            pl.BlockSpec((tr, KKC1), lambda i, j: (i, 0)),
            pl.BlockSpec((KKC1, tc2), lambda i, j: (0, j)),
            pl.BlockSpec((1, tc2), lambda i, j: (0, j)),
        ],
        out_specs=pl.BlockSpec((tr, tc2), lambda i, j: (i, j)),
        compiler_params=pltpu.CompilerParams(
            dimension_semantics=("parallel", "parallel")),
        cost_estimate=cost,
    )(lhs, w2, bias2)

    out = out_flat[:R, :C2].reshape(N, Ho, Wo, C2)
    return jnp.transpose(out, (0, 3, 1, 2))               # NHWC -> NCHW


def _reference(x_nchw, weight, gamma, beta, running_mean, running_var,
               *, k=3, s=1, p=None, d=1, eps=1e-5):
    """Pure-JAX reference: lax conv + eval-mode BN + SiLU (NCHW)."""
    pad = autopad(k, p, d)
    y = jax.lax.conv_general_dilated(
        x_nchw.astype(jnp.float32), weight.astype(jnp.float32),
        window_strides=(s, s), padding=[(pad, pad), (pad, pad)],
        rhs_dilation=(d, d),
        dimension_numbers=("NCHW", "OIHW", "NCHW"))
    scale = gamma / jnp.sqrt(running_var + eps)
    bias = beta - running_mean * scale
    y = y * scale[None, :, None, None] + bias[None, :, None, None]
    return y * jax.nn.sigmoid(y)


if __name__ == "__main__":
    # Small shapes consistent with the module: Conv(c1=4, c2=8, k=3)
    N, C1, H, W = 2, 4, 16, 16
    C2, K = 8, 3

    key = jax.random.PRNGKey(0)
    kx_, kw, kg, kb, km, kv = jax.random.split(key, 6)

    x = jax.random.normal(kx_, (N, C1, H, W), dtype=jnp.float32)
    # nn.Conv2d weight shape: (c2, c1/g, k, k), bias=False
    weight = jax.random.normal(kw, (C2, C1, K, K), dtype=jnp.float32) * 0.1
    # BatchNorm2d params + running stats (deterministic, non-trivial)
    gamma = 1.0 + 0.1 * jax.random.normal(kg, (C2,), dtype=jnp.float32)
    beta = 0.1 * jax.random.normal(kb, (C2,), dtype=jnp.float32)
    running_mean = 0.05 * jax.random.normal(km, (C2,), dtype=jnp.float32)
    running_var = 1.0 + 0.1 * jax.random.uniform(kv, (C2,), dtype=jnp.float32)

    out = conv_bn_silu(x, weight, gamma, beta, running_mean, running_var, k=K)
    out = jax.block_until_ready(out)

    ref = _reference(x, weight, gamma, beta, running_mean, running_var, k=K)
    assert out.shape == (N, C2, H, W), out.shape
    err = float(jnp.max(jnp.abs(out - ref)))
    assert jnp.allclose(out, ref, atol=1e-4, rtol=1e-4), err

    print("KERNEL_OK")
</pallas_src>

<mosaic_0001>
module attributes {stable_mosaic.version = 11 : i64} {
  func.func @_matmul_bias_silu_kernel(%arg0: i32, %arg1: i32, %arg2: memref<256x36xf32, #tpu.memory_space<vmem>>, %arg3: memref<36x8xf32, #tpu.memory_space<vmem>>, %arg4: memref<1x8xf32, #tpu.memory_space<vmem>>, %arg5: memref<256x8xf32, #tpu.memory_space<vmem>>) attributes {dimension_semantics = [#tpu.dimension_semantics<parallel>, #tpu.dimension_semantics<parallel>], iteration_bounds = array<i64: 2, 1>, scalar_prefetch = 0 : i64, scratch_operands = 0 : i64, tpu.core_type = #tpu.core_type<tc>, window_params = [{transform_indices = @transform_0, window_bounds = array<i64: 256, 36>}, {transform_indices = @transform_1, window_bounds = array<i64: 36, 8>}, {transform_indices = @transform_2, window_bounds = array<i64: 1, 8>}, {transform_indices = @transform_3, window_bounds = array<i64: 256, 8>}]} {
    %c0 = arith.constant 0 : index
    %c0_0 = arith.constant 0 : index
    %0 = vector.load %arg2[%c0, %c0_0] : memref<256x36xf32, #tpu.memory_space<vmem>>, vector<256x36xf32>
    %c0_1 = arith.constant 0 : index
    %c0_2 = arith.constant 0 : index
    %1 = vector.load %arg3[%c0_1, %c0_2] : memref<36x8xf32, #tpu.memory_space<vmem>>, vector<36x8xf32>
    %cst = arith.constant dense<0.000000e+00> : vector<256x8xf32>
    %2 = tpu.matmul %0, %1, %cst {dimension_numbers = #tpu.dot_dimension_numbers<[1], [0], [0], [1], [0, 0, 1, 1], [], []>} : vector<256x36xf32>, vector<36x8xf32>, vector<256x8xf32> -> vector<256x8xf32>
    %c0_3 = arith.constant 0 : index
    %c0_4 = arith.constant 0 : index
    %3 = vector.load %arg4[%c0_3, %c0_4] : memref<1x8xf32, #tpu.memory_space<vmem>>, vector<1x8xf32>
    %4 = vector.broadcast %3 : vector<1x8xf32> to vector<256x8xf32>
    %5 = arith.addf %2, %4 : vector<256x8xf32>
    %6 = arith.negf %5 : vector<256x8xf32>
    %7 = math.exp %6 : vector<256x8xf32>
    %cst_5 = arith.constant 1.000000e+00 : f32
    %8 = vector.broadcast %cst_5 : f32 to vector<256x8xf32>
    %9 = arith.addf %8, %7 : vector<256x8xf32>
    %10 = arith.divf %8, %9 : vector<256x8xf32>
    %11 = arith.mulf %5, %10 : vector<256x8xf32>
    %c0_6 = arith.constant 0 : index
    %c0_7 = arith.constant 0 : index
    %12 = vector.load %arg5[%c0_6, %c0_7] : memref<256x8xf32, #tpu.memory_space<vmem>>, vector<256x8xf32>
    tpu.vector_store %arg5[%c0_6, %c0_7], %11 {strides = array<i32>} : memref<256x8xf32, #tpu.memory_space<vmem>>, vector<256x8xf32>,
    return
  }
  func.func @transform_0(%arg0: i32, %arg1: i32) -> (i32, i32) {
    %c0_i32 = arith.constant 0 : i32
    %c0_i32_0 = arith.constant 0 : i32
    return %arg0, %c0_i32 : i32, i32
  }
  func.func @transform_1(%arg0: i32, %arg1: i32) -> (i32, i32) {
    %c0_i32 = arith.constant 0 : i32
    %c0_i32_0 = arith.constant 0 : i32
    return %c0_i32, %arg1 : i32, i32
  }
  func.func @transform_2(%arg0: i32, %arg1: i32) -> (i32, i32) {
    %c0_i32 = arith.constant 0 : i32
    %c0_i32_0 = arith.constant 0 : i32
    return %c0_i32, %arg1 : i32, i32
  }
  func.func @transform_3(%arg0: i32, %arg1: i32) -> (i32, i32) {
    %c0_i32 = arith.constant 0 : i32
    return %arg0, %arg1 : i32, i32
  }
}

</mosaic_0001>

<llo_original>
// kernel: tpu_custom_call.1
$region0: #{tpu_custom_call.1}
  #allocation0 [shape = 'u32[]', space=smem, size = 0x4, offset = 0x4, fixed_abs, tag = 'smem constant byte address 0x4 - core index']
  #allocation1 [shape = 'u32[144,128]{1,0:T(1,128)}', space=vmem, size = 0x12000, scoped, tag = 'internal scratch']
  %s0 = inlined_call_operand.vmem [shape: f32[512,36], index: 0, kind: input, shape index: {}]
  %s1 = inlined_call_operand.vmem [shape: f32[36,8], index: 1, kind: input, shape index: {}]
  %s2 = inlined_call_operand.vmem [shape: f32[1,8], index: 2, kind: input, shape index: {}]
  %s3 = inlined_call_operand.vmem [shape: f32[512,8], index: 3, kind: output, shape index: {}]
  %s4 = sld [smem:[#allocation0]]
  $region45: #{tpu_custom_call.1} parent=0
    _
  %s6 = ssub.s32 1, %s4
  %s7 = scalar_select 0, %s6, %s4
  loop: start=0, step=1, limit=4
  $region2: #{tpu_custom_call.1} parent=0 // loop_pre_header
    _
  $region3: #{tpu_custom_call.1} parent=0 // loop_header
    %s9 = sphi 0, %s13
    %p10 = scmp.ge.s32.totalorder %s9, 4
    %s16 = sphi 0, %s28
    %s17 = sphi 0, %s24
    %s18 = sphi 0, %s16
    %s19 = sphi 0, %s17
    %s20 = sphi 0, %s18
    %s21 = sphi 0, %s19
    %s31 = sphi 0, %s33
    %s34 = sphi 0, %s31
    %s35 = sphi 0, %s34
    %s51 = sphi 0, %s35
    %s57 = sphi 0, %s59
    %s60 = sphi 0, %s57
    %s61 = sphi 0, %s60
    %s77 = sphi 0, %s61
    %s83 = sphi 0, %s85
    %s86 = sphi 0, %s83
    %s87 = sphi 0, %s86
    %s103 = sphi 0, %s87
    %s111 = sphi 0, %s113
    %s114 = sphi 0, %s111
    %s115 = sphi 0, %s114
    %s131 = sphi 0, %s115
  $region4: #{tpu_custom_call.1} parent=0 // loop_header_branch
    %12 = sbr.rel (%p10) target = $region8
  $region5: #{tpu_custom_call.1} parent=0 // loop_body
    %s14 = ssub.s32 %s9, 1
    %s15 = ssub.s32 %s9, 2
    %s22 = sadd.s32 1, %s17
    %p23 = scmp.ge.s32.totalorder %s22, 1
    %s24 = scalar_select %p23, 0, %s22
    %s25 = sadd.s32 1, %s16
    %s26 = scalar_select %p23, %s25, %s16
    %p27 = scmp.ge.s32.totalorder %s26, 2
    %s28 = scalar_select %p27, 0, %s26
    %s29 = ssub.s32 %s16, %s28
    %p30 = scmp.eq.s32.totalorder %s29, 0
    %s32 = sadd.s32 %s31, 1
    %s33 = scalar_select %p30, %s31, %s32
    %p36 = pneg %p30
    %p37 = scmp.eq.s32.totalorder %s9, 1
    %p38 = por %p36, %p37
    %p39 = scmp.ne.s32.totalorder %s31, %s34
    %p40 = scmp.eq.s32.totalorder %s9, 0
    %p41 = por %p39, %p40
    %p42 = scmp.ne.s32.totalorder %s31, %s34
    %p43 = scmp.eq.s32.totalorder %s14, 1
    %p44 = por %p42, %p43
    %p45 = scmp.ne.s32.totalorder %s34, %s35
    %p46 = scmp.eq.s32.totalorder %s14, 0
    %p47 = por %p45, %p46
    %p48 = scmp.ne.s32.totalorder %s34, %s35
    %p49 = scmp.eq.s32.totalorder %s15, 1
    %p50 = por %p48, %p49
    %p52 = scmp.ne.s32.totalorder %s35, %s51
    %p53 = scmp.eq.s32.totalorder %s15, 0
    %p54 = por %p52, %p53
    %s55 = ssub.s32 %s17, %s24
    %p56 = scmp.eq.s32.totalorder %s55, 0
    %s58 = sadd.s32 %s57, 1
    %s59 = scalar_select %p56, %s57, %s58
    %p62 = pneg %p56
    %p63 = scmp.eq.s32.totalorder %s9, 1
    %p64 = por %p62, %p63
    %p65 = scmp.ne.s32.totalorder %s57, %s60
    %p66 = scmp.eq.s32.totalorder %s9, 0
    %p67 = por %p65, %p66
    %p68 = scmp.ne.s32.totalorder %s57, %s60
    %p69 = scmp.eq.s32.totalorder %s14, 1
    %p70 = por %p68, %p69
    %p71 = scmp.ne.s32.totalorder %s60, %s61
    %p72 = scmp.eq.s32.totalorder %s14, 0
    %p73 = por %p71, %p72
    %p74 = scmp.ne.s32.totalorder %s60, %s61
    %p75 = scmp.eq.s32.totalorder %s15, 1
    %p76 = por %p74, %p75
    %p78 = scmp.ne.s32.totalorder %s61, %s77
    %p79 = scmp.eq.s32.totalorder %s15, 0
    %p80 = por %p78, %p79
    %s81 = ssub.s32 %s17, %s24
    %p82 = scmp.eq.s32.totalorder %s81, 0
    %s84 = sadd.s32 %s83, 1
    %s85 = scalar_select %p82, %s83, %s84
    %p88 = pneg %p82
    %p89 = scmp.eq.s32.totalorder %s9, 1
    %p90 = por %p88, %p89
    %p91 = scmp.ne.s32.totalorder %s83, %s86
    %p92 = scmp.eq.s32.totalorder %s9, 0
    %p93 = por %p91, %p92
    %p94 = scmp.ne.s32.totalorder %s83, %s86
    %p95 = scmp.eq.s32.totalorder %s14, 1
    %p96 = por %p94, %p95
    %p97 = scmp.ne.s32.totalorder %s86, %s87
    %p98 = scmp.eq.s32.totalorder %s14, 0
    %p99 = por %p97, %p98
    %p100 = scmp.ne.s32.totalorder %s86, %s87
    %p101 = scmp.eq.s32.totalorder %s15, 1
    %p102 = por %p100, %p101
    %p104 = scmp.ne.s32.totalorder %s87, %s103
    %p105 = scmp.eq.s32.totalorder %s15, 0
    %p106 = por %p104, %p105
    %s107 = ssub.s32 %s16, %s28
    %s108 = ssub.s32 %s17, %s24
    %s109 = sor.u32 %s107, %s108
    %p110 = scmp.eq.s32.totalorder %s109, 0
    %s112 = sadd.s32 %s111, 1
    %s113 = scalar_select %p110, %s111, %s112
    %p116 = pneg %p110
    %p117 = scmp.eq.s32.totalorder %s9, 1
    %p118 = por %p116, %p117
    %p119 = scmp.ne.s32.totalorder %s111, %s114
    %p120 = scmp.eq.s32.totalorder %s9, 0
    %p121 = por %p119, %p120
    %p122 = scmp.ne.s32.totalorder %s111, %s114
    %p123 = scmp.eq.s32.totalorder %s14, 1
    %p124 = por %p122, %p123
    %p125 = scmp.ne.s32.totalorder %s114, %s115
    %p126 = scmp.eq.s32.totalorder %s14, 0
    %p127 = por %p125, %p126
    %p128 = scmp.ne.s32.totalorder %s114, %s115
    %p129 = scmp.eq.s32.totalorder %s15, 1
    %p130 = por %p128, %p129
    %p132 = scmp.ne.s32.totalorder %s115, %s131
    %p133 = scmp.eq.s32.totalorder %s15, 0
    %p134 = por %p132, %p133
    %p135 = scmp.le.s32.totalorder 1, %s9
    %p136 = scmp.lt.s32.totalorder %s9, 3
    %p137 = pnand %p135, %p136
    %p138 = pneg %p137
    // Predicated region
    $region9: #{tpu_custom_call.1} parent=5 // pred_check
      _
    $region10: #{tpu_custom_call.1} parent=5 // pred_check_branch
      %140 = sbr.rel (%p137) target = $region12
    $region11: #{tpu_custom_call.1} parent=5 // pred_region
      %s141 = ssub.s32 %s9, 1
      // Predicated region
      $region13: #{tpu_custom_call.1} parent=11 // pred_check
        %p142 = pneg %p73
      $region14: #{tpu_custom_call.1} parent=11 // pred_check_branch
        %144 = sbr.rel (%p142) target = $region16
      $region15: #{tpu_custom_call.1} parent=11 // pred_region
        %p145 = scmp.lt.s32.totalorder %s19, 0
        %s146 = scalar_select %p145, %s19, 0
        %s147 = smul.addr %s146, 8
        %s148 = scalar_lea.vmem %s1, %s147
      $region16: #{tpu_custom_call.1} parent=11 // pred_fallthru
        _
      // Predicated region
      $region17: #{tpu_custom_call.1} parent=11 // pred_check
        %p149 = pneg %p99
      $region18: #{tpu_custom_call.1} parent=11 // pred_check_branch
        %151 = sbr.rel (%p149) target = $region20
      $region19: #{tpu_custom_call.1} parent=11 // pred_region
        %p152 = scmp.lt.s32.totalorder %s19, 0
        %s153 = scalar_select %p152, %s19, 0
        %s154 = scalar_lea.vmem %s2, %s153
      $region20: #{tpu_custom_call.1} parent=11 // pred_fallthru
        _
    $region12: #{tpu_custom_call.1} parent=5 // pred_fallthru
      _
    %p155 = scmp.lt.s32.totalorder %s9, 2
    // Predicated region
    $region21: #{tpu_custom_call.1} parent=5 // pred_check
      %p156 = pneg %p155
    $region22: #{tpu_custom_call.1} parent=5 // pred_check_branch
      %158 = sbr.rel (%p156) target = $region24
    $region23: #{tpu_custom_call.1} parent=5 // pred_region
      // Predicated region
      $region25: #{tpu_custom_call.1} parent=23 // pred_check
        %p159 = pneg %p41
      $region26: #{tpu_custom_call.1} parent=23 // pred_check_branch
        %161 = sbr.rel (%p159) target = $region28
      $region27: #{tpu_custom_call.1} parent=23 // pred_region
        %s162 = smul.u32 32, %s16
        %p163 = scmp.lt.s32.totalorder %s162, 63
        %s164 = scalar_select %p163, %s162, 63
        %s165 = smul.addr %s164, 8
        %s166 = scalar_lea.vmem %s0, %s165
        %s167 = smul.u32 32, %s16
      $region28: #{tpu_custom_call.1} parent=23 // pred_fallthru
        _
    $region24: #{tpu_custom_call.1} parent=5 // pred_fallthru
      _
    %p168 = scmp.le.s32.totalorder 1, %s9
    %p169 = scmp.lt.s32.totalorder %s9, 3
    %p170 = pnand %p168, %p169
    %p171 = pneg %p170
    // Predicated region
    $region29: #{tpu_custom_call.1} parent=5 // pred_check
      _
    $region30: #{tpu_custom_call.1} parent=5 // pred_check_branch
      %173 = sbr.rel (%p170) target = $region32
    $region31: #{tpu_custom_call.1} parent=5 // pred_region
      %s174 = ssub.s32 %s9, 1
      %s175 = smul.u32 32, %s18
      %p176 = scmp.lt.s32.totalorder %s175, 63
      %s177 = scalar_select %p176, %s175, 63
      %s178 = smul.addr %s177, 8
      %s179 = scalar_lea.vmem %s0, %s178
      %p180 = pneg %p47
      %p181 = pneg %p44
      %p182 = scmp.lt.s32.totalorder %s19, 0
      %s183 = scalar_select %p182, %s19, 0
      %s184 = smul.addr %s183, 8
      %s185 = scalar_lea.vmem %s1, %s184
      %p186 = pneg %p73
      %p187 = pneg %p70
      %p188 = scmp.lt.s32.totalorder %s19, 0
      %s189 = scalar_select %p188, %s19, 0
      %s190 = scalar_lea.vmem %s2, %s189
      %p191 = pneg %p99
      %p192 = pneg %p96
      %p193 = pneg %p127
      %p194 = pneg %p124
      %s195 = smul.u32 32, %s18
      %p196 = scmp.lt.s32.totalorder %s195, 63
      %s197 = scalar_select %p196, %s195, 63
      %p198 = scmp.lt.s32.totalorder %s19, 0
      %s199 = scalar_select %p198, %s19, 0
      %s200 = sadd.s32 %s199, %s197
      %s201 = smul.addr %s200, 8
      %s202 = scalar_lea.vmem %s3, %s201
      %s203 = smul.u32 32, %s18
      %p204 = scmp.lt.s32.totalorder %s203, 63
      %s205 = scalar_select %p204, %s203, 63
      %s206 = smul.addr %s205, 8
      %s207 = scalar_lea.vmem %s0, %s206
      %s208 = smul.u32 32, %s18
      %p209 = scmp.lt.s32.totalorder %s19, 0
      %s210 = scalar_select %p209, %s19, 0
      %s211 = smul.addr %s210, 8
      %s212 = scalar_lea.vmem %s1, %s211
      %p213 = scmp.lt.s32.totalorder %s19, 0
      %s214 = scalar_select %p213, %s19, 0
      %s215 = scalar_lea.vmem %s2, %s214
      %s216 = smul.u32 32, %s18
      %p217 = scmp.lt.s32.totalorder %s216, 63
      %s218 = scalar_select %p217, %s216, 63
      %p219 = scmp.lt.s32.totalorder %s19, 0
      %s220 = scalar_select %p219, %s19, 0
      %s221 = sadd.s32 %s220, %s218
      %s222 = smul.addr %s221, 8
      %s223 = scalar_lea.vmem %s3, %s222
      %s224 = smul.u32 32, %s18
      %v225 = vld [vmem:[%s207] sm:$0xff]
      %v226 = vld [vmem:[%s207 + $0x8] sm:$0xff]
      %v227 = vld [vmem:[%s207 + $0x10] sm:$0xff]
      %v228 = vld [vmem:[%s207 + $0x18] sm:$0xff]
      %v229 = vld [vmem:[%s207 + $0x20] sm:$0xff]
      %v230 = vld [vmem:[%s207 + $0x28] sm:$0xff]
      %v231 = vld [vmem:[%s207 + $0x30] sm:$0xff]
      %v232 = vld [vmem:[%s207 + $0x38] sm:$0xff]
      %v233 = vld [vmem:[%s207 + $0x40] sm:$0xff]
      %v234 = vld [vmem:[%s207 + $0x48] sm:$0xff]
      %v235 = vld [vmem:[%s207 + $0x50] sm:$0xff]
      %v236 = vld [vmem:[%s207 + $0x58] sm:$0xff]
      %v237 = vld [vmem:[%s207 + $0x60] sm:$0xff]
      %v238 = vld [vmem:[%s207 + $0x68] sm:$0xff]
      %v239 = vld [vmem:[%s207 + $0x70] sm:$0xff]
      %v240 = vld [vmem:[%s207 + $0x78] sm:$0xff]
      %v241 = vld [vmem:[%s207 + $0x80] sm:$0xff]
      %v242 = vld [vmem:[%s207 + $0x88] sm:$0xff]
      %v243 = vld [vmem:[%s207 + $0x90] sm:$0xff]
      %v244 = vld [vmem:[%s207 + $0x98] sm:$0xff]
      %v245 = vld [vmem:[%s207 + $0xa0] sm:$0xff]
      %v246 = vld [vmem:[%s207 + $0xa8] sm:$0xff]
      %v247 = vld [vmem:[%s207 + $0xb0] sm:$0xff]
      %v248 = vld [vmem:[%s207 + $0xb8] sm:$0xff]
      %v249 = vld [vmem:[%s207 + $0xc0] sm:$0xff]
      %v250 = vld [vmem:[%s207 + $0xc8] sm:$0xff]
      %v251 = vld [vmem:[%s207 + $0xd0] sm:$0xff]
      %v252 = vld [vmem:[%s207 + $0xd8] sm:$0xff]
      %v253 = vld [vmem:[%s207 + $0xe0] sm:$0xff]
      %v254 = vld [vmem:[%s207 + $0xe8] sm:$0xff]
      %v255 = vld [vmem:[%s207 + $0xf0] sm:$0xff]
      %v256 = vld [vmem:[%s207 + $0xf8] sm:$0xff]
      %v257 = vld [vmem:[%s212] sm:$0xff]
      %v258 = vld [vmem:[%s212 + $0x8] sm:$0xff]
      %v259 = vld [vmem:[%s212 + $0x10] sm:$0xff]
      %v260 = vld [vmem:[%s212 + $0x18] sm:$0xff]
      %v261 = vld [vmem:[%s212 + $0x20] sm:$0xf]
      %v262 = vld [vmem:[%s215] sm:$0x1]
      %v264 = vlaneseq
      %v265 = vshrl.u32 %v264, 7
      %v266 = vsub.s32 0, %v265
      %v267 = vrot.slane %v262, %v266
      %vm269 = vcmask 293888
      %v271 = vsel %vm269, %v225, 0
      %v274 = vsel %vm269, %v226, 0
      %v277 = vsel %vm269, %v227, 0
      %v280 = vsel %vm269, %v228, 0
      %v283 = vsel %vm269, %v229, 0
      %v286 = vsel %vm269, %v230, 0
      %v289 = vsel %vm269, %v231, 0
      %v292 = vsel %vm269, %v232, 0
      %v295 = vsel %vm269, %v233, 0
      %v298 = vsel %vm269, %v234, 0
      %v301 = vsel %vm269, %v235, 0
      %v304 = vsel %vm269, %v236, 0
      %v307 = vsel %vm269, %v237, 0
      %v310 = vsel %vm269, %v238, 0
      %v313 = vsel %vm269, %v239, 0
      %v316 = vsel %vm269, %v240, 0
      %v319 = vsel %vm269, %v241, 0
      %v322 = vsel %vm269, %v242, 0
      %v325 = vsel %vm269, %v243, 0
      %v328 = vsel %vm269, %v244, 0
      %v331 = vsel %vm269, %v245, 0
      %v334 = vsel %vm269, %v246, 0
      %v337 = vsel %vm269, %v247, 0
      %v340 = vsel %vm269, %v248, 0
      %v343 = vsel %vm269, %v249, 0
      %v346 = vsel %vm269, %v250, 0
      %v349 = vsel %vm269, %v251, 0
      %v352 = vsel %vm269, %v252, 0
      %v355 = vsel %vm269, %v253, 0
      %v358 = vsel %vm269, %v254, 0
      %v361 = vsel %vm269, %v255, 0
      %v364 = vsel %vm269, %v256, 0
      %vm366 = vcmask 1043456
      %v368 = vsel %vm366, %v261, 0
      %370 = vmatprep.subr.mxu0 0.0
      %371 = vmatpush1.msra.mxu0 %v257
      %372 = vmatprep.subr.mxu0 0.0
      %373 = vmatpush1.msra.mxu0 %v258
      %374 = vmatprep.subr.mxu0 0.0
      %375 = vmatpush1.msra.mxu0 %v259
      %376 = vmatprep.subr.mxu0 0.0
      %377 = vmatpush1.msra.mxu0 %v260
      %378 = vmatprep.subr.mxu0 0.0
      %379 = vmatpush1.msra.mxu0 %v368
      %380 = vmatprep.subr.mxu0 0.0
      %381 = vmatpush1.msra.mxu0 0.0
      %382 = vmatprep.subr.mxu0 0.0
      %383 = vmatpush1.msra.mxu0 0.0
      %384 = vmatprep.subr.mxu0 0.0
      %385 = vmatpush1.msra.mxu0 0.0
      %386 = vmatprep.subr.mxu0 0.0
      %387 = vmatpush1.msra.mxu0 0.0
      %388 = vmatprep.subr.mxu0 0.0
      %389 = vmatpush1.msra.mxu0 0.0
      %390 = vmatprep.subr.mxu0 0.0
      %391 = vmatpush1.msra.mxu0 0.0
      %392 = vmatprep.subr.mxu0 0.0
      %393 = vmatpush1.msra.mxu0 0.0
      %394 = vmatprep.subr.mxu0 0.0
      %395 = vmatpush1.msra.mxu0 0.0
      %396 = vmatprep.subr.mxu0 0.0
      %397 = vmatpush1.msra.mxu0 0.0
      %398 = vmatprep.subr.mxu0 0.0
      %399 = vmatpush1.msra.mxu0 0.0
      %400 = vmatprep.subr.mxu0 0.0
      %401 = vmatpush1.msra.mxu0 0.0
      %402 = vmatprep.subr.mxu0 0.0
      %403 = vmatpush1.msra.mxu0 0.0
      %404 = vmatprep.subr.mxu0 0.0
      %405 = vmatpush1.msra.mxu0 0.0
      %406 = vmatprep.subr.mxu0 0.0
      %407 = vmatpush1.msra.mxu0 0.0
      %408 = vmatprep.subr.mxu0 0.0
      %409 = vmatpush1.msra.mxu0 0.0
      %410 = vmatprep.subr.mxu0 0.0
      %411 = vmatpush1.msra.mxu0 0.0
      %412 = vmatprep.subr.mxu0 0.0
      %413 = vmatpush1.msra.mxu0 0.0
      %414 = vmatprep.subr.mxu0 0.0
      %415 = vmatpush1.msra.mxu0 0.0
      %416 = vmatprep.subr.mxu0 0.0
      %417 = vmatpush1.msra.mxu0 0.0
      %418 = vmatprep.subr.mxu0 0.0
      %419 = vmatpush1.msra.mxu0 0.0
      %420 = vmatprep.subr.mxu0 0.0
      %421 = vmatpush1.msra.mxu0 0.0
      %422 = vmatprep.subr.mxu0 0.0
      %423 = vmatpush1.msra.mxu0 0.0
      %424 = vmatprep.subr.mxu0 0.0
      %425 = vmatpush1.msra.mxu0 0.0
      %426 = vmatprep.subr.mxu0 0.0
      %427 = vmatpush1.msra.mxu0 0.0
      %428 = vmatprep.subr.mxu0 0.0
      %429 = vmatpush1.msra.mxu0 0.0
      %430 = vmatprep.subr.mxu0 0.0
      %431 = vmatpush1.msra.mxu0 0.0
      %432 = vmatprep.subr.mxu0 0.0
      %433 = vmatpush1.msra.mxu0 0.0
      %434 = vmatprep.mubr.f32.mxu0 0.0
      %435 = vmatmul.mubr.f32.gmra.mrb[0].mxu0 %v271
      %v436 = vpop.f32.mrb[0].mxu0
      %v437 = vadd.f32 %v267, %v436
      %v438 = vpop.f32.mrb[0].mxu0
      %439 = vmatprep.mubr.f32.mxu0 0.0
      %440 = vmatmul.mubr.f32.gmra.mrb[0].mxu0 %v274
      %v441 = vpop.f32.mrb[0].mxu0
      %v442 = vadd.f32 %v267, %v441
      %v443 = vpop.f32.mrb[0].mxu0
      %444 = vmatprep.mubr.f32.mxu0 0.0
      %445 = vmatmul.mubr.f32.gmra.mrb[0].mxu0 %v277
      %v446 = vpop.f32.mrb[0].mxu0
      %v447 = vadd.f32 %v267, %v446
      %v448 = vpop.f32.mrb[0].mxu0
      %449 = vmatprep.mubr.f32.mxu0 0.0
      %450 = vmatmul.mubr.f32.gmra.mrb[0].mxu0 %v280
      %v451 = vpop.f32.mrb[0].mxu0
      %v452 = vadd.f32 %v267, %v451
      %v453 = vpop.f32.mrb[0].mxu0
      %454 = vmatprep.mubr.f32.mxu0 0.0
      %455 = vmatmul.mubr.f32.gmra.mrb[0].mxu0 %v283
      %v456 = vpop.f32.mrb[0].mxu0
      %v457 = vadd.f32 %v267, %v456
      %v458 = vpop.f32.mrb[0].mxu0
      %459 = vmatprep.mubr.f32.mxu0 0.0
      %460 = vmatmul.mubr.f32.gmra.mrb[0].mxu0 %v286
      %v461 = vpop.f32.mrb[0].mxu0
      %v462 = vadd.f32 %v267, %v461
      %v463 = vpop.f32.mrb[0].mxu0
      %464 = vmatprep.mubr.f32.mxu0 0.0
      %465 = vmatmul.mubr.f32.gmra.mrb[0].mxu0 %v289
      %v466 = vpop.f32.mrb[0].mxu0
      %v467 = vadd.f32 %v267, %v466
      %v468 = vpop.f32.mrb[0].mxu0
      %469 = vmatprep.mubr.f32.mxu0 0.0
      %470 = vmatmul.mubr.f32.gmra.mrb[0].mxu0 %v292
      %v471 = vpop.f32.mrb[0].mxu0
      %v472 = vadd.f32 %v267, %v471
      %v473 = vpop.f32.mrb[0].mxu0
      %474 = vmatprep.mubr.f32.mxu0 0.0
      %475 = vmatmul.mubr.f32.gmra.mrb[0].mxu0 %v295
      %v476 = vpop.f32.mrb[0].mxu0
      %v477 = vadd.f32 %v267, %v476
      %v478 = vpop.f32.mrb[0].mxu0
      %479 = vmatprep.mubr.f32.mxu0 0.0
      %480 = vmatmul.mubr.f32.gmra.mrb[0].mxu0 %v298
      %v481 = vpop.f32.mrb[0].mxu0
      %v482 = vadd.f32 %v267, %v481
      %v483 = vpop.f32.mrb[0].mxu0
      %484 = vmatprep.mubr.f32.mxu0 0.0
      %485 = vmatmul.mubr.f32.gmra.mrb[0].mxu0 %v301
      %v486 = vpop.f32.mrb[0].mxu0
      %v487 = vadd.f32 %v267, %v486
      %v488 = vpop.f32.mrb[0].mxu0
      %489 = vmatprep.mubr.f32.mxu0 0.0
      %490 = vmatmul.mubr.f32.gmra.mrb[0].mxu0 %v304
      %v491 = vpop.f32.mrb[0].mxu0
      %v492 = vadd.f32 %v267, %v491
      %v493 = vpop.f32.mrb[0].mxu0
      %494 = vmatprep.mubr.f32.mxu0 0.0
      %495 = vmatmul.mubr.f32.gmra.mrb[0].mxu0 %v307
      %v496 = vpop.f32.mrb[0].mxu0
      %v497 = vadd.f32 %v267, %v496
      %v498 = vpop.f32.mrb[0].mxu0
      %499 = vmatprep.mubr.f32.mxu0 0.0
      %500 = vmatmul.mubr.f32.gmra.mrb[0].mxu0 %v310
      %v501 = vpop.f32.mrb[0].mxu0
      %v502 = vadd.f32 %v267, %v501
      %v503 = vpop.f32.mrb[0].mxu0
      %504 = vmatprep.mubr.f32.mxu0 0.0
      %505 = vmatmul.mubr.f32.gmra.mrb[0].mxu0 %v313
      %v506 = vpop.f32.mrb[0].mxu0
      %v507 = vadd.f32 %v267, %v506
      %v508 = vpop.f32.mrb[0].mxu0
      %509 = vmatprep.mubr.f32.mxu0 0.0
      %510 = vmatmul.mubr.f32.gmra.mrb[0].mxu0 %v316
      %v511 = vpop.f32.mrb[0].mxu0
      %v512 = vadd.f32 %v267, %v511
      %v513 = vpop.f32.mrb[0].mxu0
      %514 = vmatprep.mubr.f32.mxu0 0.0
      %515 = vmatmul.mubr.f32.gmra.mrb[0].mxu0 %v319
      %v516 = vpop.f32.mrb[0].mxu0
      %v517 = vadd.f32 %v267, %v516
      %v518 = vpop.f32.mrb[0].mxu0
      %519 = vmatprep.mubr.f32.mxu0 0.0
      %520 = vmatmul.mubr.f32.gmra.mrb[0].mxu0 %v322
      %v521 = vpop.f32.mrb[0].mxu0
      %v522 = vadd.f32 %v267, %v521
      %v523 = vpop.f32.mrb[0].mxu0
      %524 = vmatprep.mubr.f32.mxu0 0.0
      %525 = vmatmul.mubr.f32.gmra.mrb[0].mxu0 %v325
      %v526 = vpop.f32.mrb[0].mxu0
      %v527 = vadd.f32 %v267, %v526
      %v528 = vpop.f32.mrb[0].mxu0
      %529 = vmatprep.mubr.f32.mxu0 0.0
      %530 = vmatmul.mubr.f32.gmra.mrb[0].mxu0 %v328
      %v531 = vpop.f32.mrb[0].mxu0
      %v532 = vadd.f32 %v267, %v531
      %v533 = vpop.f32.mrb[0].mxu0
      %534 = vmatprep.mubr.f32.mxu0 0.0
      %535 = vmatmul.mubr.f32.gmra.mrb[0].mxu0 %v331
      %v536 = vpop.f32.mrb[0].mxu0
      %v537 = vadd.f32 %v267, %v536
      %v538 = vpop.f32.mrb[0].mxu0
      %539 = vmatprep.mubr.f32.mxu0 0.0
      %540 = vmatmul.mubr.f32.gmra.mrb[0].mxu0 %v334
      %v541 = vpop.f32.mrb[0].mxu0
      %v542 = vadd.f32 %v267, %v541
      %v543 = vpop.f32.mrb[0].mxu0
      %544 = vmatprep.mubr.f32.mxu0 0.0
      %545 = vmatmul.mubr.f32.gmra.mrb[0].mxu0 %v337
      %v546 = vpop.f32.mrb[0].mxu0
      %v547 = vadd.f32 %v267, %v546
      %v548 = vpop.f32.mrb[0].mxu0
      %549 = vmatprep.mubr.f32.mxu0 0.0
      %550 = vmatmul.mubr.f32.gmra.mrb[0].mxu0 %v340
      %v551 = vpop.f32.mrb[0].mxu0
      %v552 = vadd.f32 %v267, %v551
      %v553 = vpop.f32.mrb[0].mxu0
      %554 = vmatprep.mubr.f32.mxu0 0.0
      %555 = vmatmul.mubr.f32.gmra.mrb[0].mxu0 %v343
      %v556 = vpop.f32.mrb[0].mxu0
      %v557 = vadd.f32 %v267, %v556
      %v558 = vpop.f32.mrb[0].mxu0
      %559 = vmatprep.mubr.f32.mxu0 0.0
      %560 = vmatmul.mubr.f32.gmra.mrb[0].mxu0 %v346
      %v561 = vpop.f32.mrb[0].mxu0
      %v562 = vadd.f32 %v267, %v561
      %v563 = vpop.f32.mrb[0].mxu0
      %564 = vmatprep.mubr.f32.mxu0 0.0
      %565 = vmatmul.mubr.f32.gmra.mrb[0].mxu0 %v349
      %v566 = vpop.f32.mrb[0].mxu0
      %v567 = vadd.f32 %v267, %v566
      %v568 = vpop.f32.mrb[0].mxu0
      %569 = vmatprep.mubr.f32.mxu0 0.0
      %570 = vmatmul.mubr.f32.gmra.mrb[0].mxu0 %v352
      %v571 = vpop.f32.mrb[0].mxu0
      %v572 = vadd.f32 %v267, %v571
      %v573 = vpop.f32.mrb[0].mxu0
      %574 = vmatprep.mubr.f32.mxu0 0.0
      %575 = vmatmul.mubr.f32.gmra.mrb[0].mxu0 %v355
      %v576 = vpop.f32.mrb[0].mxu0
      %v577 = vadd.f32 %v267, %v576
      %v578 = vpop.f32.mrb[0].mxu0
      %579 = vmatprep.mubr.f32.mxu0 0.0
      %580 = vmatmul.mubr.f32.gmra.mrb[0].mxu0 %v358
      %v581 = vpop.f32.mrb[0].mxu0
      %v582 = vadd.f32 %v267, %v581
      %v583 = vpop.f32.mrb[0].mxu0
      %584 = vmatprep.mubr.f32.mxu0 0.0
      %585 = vmatmul.mubr.f32.gmra.mrb[0].mxu0 %v361
      %v586 = vpop.f32.mrb[0].mxu0
      %v587 = vadd.f32 %v267, %v586
      %v588 = vpop.f32.mrb[0].mxu0
      %589 = vmatprep.mubr.f32.mxu0 0.0
      %590 = vmatmul.mubr.f32.gmra.mrb[0].mxu0 %v364
      %v591 = vpop.f32.mrb[0].mxu0
      %v592 = vadd.f32 %v267, %v591
      %v593 = vpop.f32.mrb[0].mxu0
      %594 = vdwg.mxu0
      %v595 = vxor.u32 %v437, 2147483648
      %v596 = vxor.u32 %v442, 2147483648
      %v597 = vxor.u32 %v447, 2147483648
      %v598 = vxor.u32 %v452, 2147483648
      %v599 = vxor.u32 %v457, 2147483648
      %v600 = vxor.u32 %v462, 2147483648
      %v601 = vxor.u32 %v467, 2147483648
      %v602 = vxor.u32 %v472, 2147483648
      %v603 = vxor.u32 %v477, 2147483648
      %v604 = vxor.u32 %v482, 2147483648
      %v605 = vxor.u32 %v487, 2147483648
      %v606 = vxor.u32 %v492, 2147483648
      %v607 = vxor.u32 %v497, 2147483648
      %v608 = vxor.u32 %v502, 2147483648
      %v609 = vxor.u32 %v507, 2147483648
      %v610 = vxor.u32 %v512, 2147483648
      %v611 = vxor.u32 %v517, 2147483648
      %v612 = vxor.u32 %v522, 2147483648
      %v613 = vxor.u32 %v527, 2147483648
      %v614 = vxor.u32 %v532, 2147483648
      %v615 = vxor.u32 %v537, 2147483648
      %v616 = vxor.u32 %v542, 2147483648
      %v617 = vxor.u32 %v547, 2147483648
      %v618 = vxor.u32 %v552, 2147483648
      %v619 = vxor.u32 %v557, 2147483648
      %v620 = vxor.u32 %v562, 2147483648
      %v621 = vxor.u32 %v567, 2147483648
      %v622 = vxor.u32 %v572, 2147483648
      %v623 = vxor.u32 %v577, 2147483648
      %v624 = vxor.u32 %v582, 2147483648
      %v625 = vxor.u32 %v587, 2147483648
      %v626 = vxor.u32 %v592, 2147483648
      %v627 = vmul.f32 %v595, 1.442695
      %v628 = vpow.pop %v627
      %v629 = vmul.f32 %v596, 1.442695
      %v630 = vpow.pop %v629
      %v631 = vmul.f32 %v597, 1.442695
      %v632 = vpow.pop %v631
      %v633 = vmul.f32 %v598, 1.442695
      %v634 = vpow.pop %v633
      %v635 = vmul.f32 %v599, 1.442695
      %v636 = vpow.pop %v635
      %v637 = vmul.f32 %v600, 1.442695
      %v638 = vpow.pop %v637
      %v639 = vmul.f32 %v601, 1.442695
      %v640 = vpow.pop %v639
      %v641 = vmul.f32 %v602, 1.442695
      %v642 = vpow.pop %v641
      %v643 = vmul.f32 %v603, 1.442695
      %v644 = vpow.pop %v643
      %v645 = vmul.f32 %v604, 1.442695
      %v646 = vpow.pop %v645
      %v647 = vmul.f32 %v605, 1.442695
      %v648 = vpow.pop %v647
      %v649 = vmul.f32 %v606, 1.442695
      %v650 = vpow.pop %v649
      %v651 = vmul.f32 %v607, 1.442695
      %v652 = vpow.pop %v651
      %v653 = vmul.f32 %v608, 1.442695
      %v654 = vpow.pop %v653
      %v655 = vmul.f32 %v609, 1.442695
      %v656 = vpow.pop %v655
      %v657 = vmul.f32 %v610, 1.442695
      %v658 = vpow.pop %v657
      %v659 = vmul.f32 %v611, 1.442695
      %v660 = vpow.pop %v659
      %v661 = vmul.f32 %v612, 1.442695
      %v662 = vpow.pop %v661
      %v663 = vmul.f32 %v613, 1.442695
      %v664 = vpow.pop %v663
      %v665 = vmul.f32 %v614, 1.442695
      %v666 = vpow.pop %v665
      %v667 = vmul.f32 %v615, 1.442695
      %v668 = vpow.pop %v667
      %v669 = vmul.f32 %v616, 1.442695
      %v670 = vpow.pop %v669
      %v671 = vmul.f32 %v617, 1.442695
      %v672 = vpow.pop %v671
      %v673 = vmul.f32 %v618, 1.442695
      %v674 = vpow.pop %v673
      %v675 = vmul.f32 %v619, 1.442695
      %v676 = vpow.pop %v675
      %v677 = vmul.f32 %v620, 1.442695
      %v678 = vpow.pop %v677
      %v679 = vmul.f32 %v621, 1.442695
      %v680 = vpow.pop %v679
      %v681 = vmul.f32 %v622, 1.442695
      %v682 = vpow.pop %v681
      %v683 = vmul.f32 %v623, 1.442695
      %v684 = vpow.pop %v683
      %v685 = vmul.f32 %v624, 1.442695
      %v686 = vpow.pop %v685
      %v687 = vmul.f32 %v625, 1.442695
      %v688 = vpow.pop %v687
      %v689 = vmul.f32 %v626, 1.442695
      %v690 = vpow.pop %v689
      %v691 = vadd.f32 %v628, 1.0
      %v692 = vadd.f32 %v630, 1.0
      %v693 = vadd.f32 %v632, 1.0
      %v694 = vadd.f32 %v634, 1.0
      %v695 = vadd.f32 %v636, 1.0
      %v696 = vadd.f32 %v638, 1.0
      %v697 = vadd.f32 %v640, 1.0
      %v698 = vadd.f32 %v642, 1.0
      %v699 = vadd.f32 %v644, 1.0
      %v700 = vadd.f32 %v646, 1.0
      %v701 = vadd.f32 %v648, 1.0
      %v702 = vadd.f32 %v650, 1.0
      %v703 = vadd.f32 %v652, 1.0
      %v704 = vadd.f32 %v654, 1.0
      %v705 = vadd.f32 %v656, 1.0
      %v706 = vadd.f32 %v658, 1.0
      %v707 = vadd.f32 %v660, 1.0
      %v708 = vadd.f32 %v662, 1.0
      %v709 = vadd.f32 %v664, 1.0
      %v710 = vadd.f32 %v666, 1.0
      %v711 = vadd.f32 %v668, 1.0
      %v712 = vadd.f32 %v670, 1.0
      %v713 = vadd.f32 %v672, 1.0
      %v714 = vadd.f32 %v674, 1.0
      %v715 = vadd.f32 %v676, 1.0
      %v716 = vadd.f32 %v678, 1.0
      %v717 = vadd.f32 %v680, 1.0
      %v718 = vadd.f32 %v682, 1.0
      %v719 = vadd.f32 %v684, 1.0
      %v720 = vadd.f32 %v686, 1.0
      %v721 = vadd.f32 %v688, 1.0
      %v722 = vadd.f32 %v690, 1.0
      %v723 = vrcp.pop %v691
      %v724 = vmul.f32 1.0, %v723
      %v725 = vrcp.pop %v692
      %v726 = vmul.f32 1.0, %v725
      %v727 = vrcp.pop %v693
      %v728 = vmul.f32 1.0, %v727
      %v729 = vrcp.pop %v694
      %v730 = vmul.f32 1.0, %v729
      %v731 = vrcp.pop %v695
      %v732 = vmul.f32 1.0, %v731
      %v733 = vrcp.pop %v696
      %v734 = vmul.f32 1.0, %v733
      %v735 = vrcp.pop %v697
      %v736 = vmul.f32 1.0, %v735
      %v737 = vrcp.pop %v698
      %v738 = vmul.f32 1.0, %v737
      %v739 = vrcp.pop %v699
      %v740 = vmul.f32 1.0, %v739
      %v741 = vrcp.pop %v700
      %v742 = vmul.f32 1.0, %v741
      %v743 = vrcp.pop %v701
      %v744 = vmul.f32 1.0, %v743
      %v745 = vrcp.pop %v702
      %v746 = vmul.f32 1.0, %v745
      %v747 = vrcp.pop %v703
      %v748 = vmul.f32 1.0, %v747
      %v749 = vrcp.pop %v704
      %v750 = vmul.f32 1.0, %v749
      %v751 = vrcp.pop %v705
      %v752 = vmul.f32 1.0, %v751
      %v753 = vrcp.pop %v706
      %v754 = vmul.f32 1.0, %v753
      %v755 = vrcp.pop %v707
      %v756 = vmul.f32 1.0, %v755
      %v757 = vrcp.pop %v708
      %v758 = vmul.f32 1.0, %v757
      %v759 = vrcp.pop %v709
      %v760 = vmul.f32 1.0, %v759
      %v761 = vrcp.pop %v710
      %v762 = vmul.f32 1.0, %v761
      %v763 = vrcp.pop %v711
      %v764 = vmul.f32 1.0, %v763
      %v765 = vrcp.pop %v712
      %v766 = vmul.f32 1.0, %v765
      %v767 = vrcp.pop %v713
      %v768 = vmul.f32 1.0, %v767
      %v769 = vrcp.pop %v714
      %v770 = vmul.f32 1.0, %v769
      %v771 = vrcp.pop %v715
      %v772 = vmul.f32 1.0, %v771
      %v773 = vrcp.pop %v716
      %v774 = vmul.f32 1.0, %v773
      %v775 = vrcp.pop %v717
      %v776 = vmul.f32 1.0, %v775
      %v777 = vrcp.pop %v718
      %v778 = vmul.f32 1.0, %v777
      %v779 = vrcp.pop %v719
      %v780 = vmul.f32 1.0, %v779
      %v781 = vrcp.pop %v720
      %v782 = vmul.f32 1.0, %v781
      %v783 = vrcp.pop %v721
      %v784 = vmul.f32 1.0, %v783
      %v785 = vrcp.pop %v722
      %v786 = vmul.f32 1.0, %v785
      %v787 = vmul.f32 %v437, %v724
      %v788 = vmul.f32 %v442, %v726
      %v789 = vmul.f32 %v447, %v728
      %v790 = vmul.f32 %v452, %v730
      %v791 = vmul.f32 %v457, %v732
      %v792 = vmul.f32 %v462, %v734
      %v793 = vmul.f32 %v467, %v736
      %v794 = vmul.f32 %v472, %v738
      %v795 = vmul.f32 %v477, %v740
      %v796 = vmul.f32 %v482, %v742
      %v797 = vmul.f32 %v487, %v744
      %v798 = vmul.f32 %v492, %v746
      %v799 = vmul.f32 %v497, %v748
      %v800 = vmul.f32 %v502, %v750
      %v801 = vmul.f32 %v507, %v752
      %v802 = vmul.f32 %v512, %v754
      %v803 = vmul.f32 %v517, %v756
      %v804 = vmul.f32 %v522, %v758
      %v805 = vmul.f32 %v527, %v760
      %v806 = vmul.f32 %v532, %v762
      %v807 = vmul.f32 %v537, %v764
      %v808 = vmul.f32 %v542, %v766
      %v809 = vmul.f32 %v547, %v768
      %v810 = vmul.f32 %v552, %v770
      %v811 = vmul.f32 %v557, %v772
      %v812 = vmul.f32 %v562, %v774
      %v813 = vmul.f32 %v567, %v776
      %v814 = vmul.f32 %v572, %v778
      %v815 = vmul.f32 %v577, %v780
      %v816 = vmul.f32 %v582, %v782
      %v817 = vmul.f32 %v587, %v784
      %v818 = vmul.f32 %v592, %v786
      %vm819 = vcmask 64512
      %820 = vst.msk [vmem:[%s223] sm:$0xff] %vm819, %v787
      %821 = vst.msk [vmem:[%s223 + $0x8] sm:$0xff] %vm819, %v788
      %822 = vst.msk [vmem:[%s223 + $0x10] sm:$0xff] %vm819, %v789
      %823 = vst.msk [vmem:[%s223 + $0x18] sm:$0xff] %vm819, %v790
      %824 = vst.msk [vmem:[%s223 + $0x20] sm:$0xff] %vm819, %v791
      %825 = vst.msk [vmem:[%s223 + $0x28] sm:$0xff] %vm819, %v792
      %826 = vst.msk [vmem:[%s223 + $0x30] sm:$0xff] %vm819, %v793
      %827 = vst.msk [vmem:[%s223 + $0x38] sm:$0xff] %vm819, %v794
      %828 = vst.msk [vmem:[%s223 + $0x40] sm:$0xff] %vm819, %v795
      %829 = vst.msk [vmem:[%s223 + $0x48] sm:$0xff] %vm819, %v796
      %830 = vst.msk [vmem:[%s223 + $0x50] sm:$0xff] %vm819, %v797
      %831 = vst.msk [vmem:[%s223 + $0x58] sm:$0xff] %vm819, %v798
      %832 = vst.msk [vmem:[%s223 + $0x60] sm:$0xff] %vm819, %v799
      %833 = vst.msk [vmem:[%s223 + $0x68] sm:$0xff] %vm819, %v800
      %834 = vst.msk [vmem:[%s223 + $0x70] sm:$0xff] %vm819, %v801
      %835 = vst.msk [vmem:[%s223 + $0x78] sm:$0xff] %vm819, %v802
      %836 = vst.msk [vmem:[%s223 + $0x80] sm:$0xff] %vm819, %v803
      %837 = vst.msk [vmem:[%s223 + $0x88] sm:$0xff] %vm819, %v804
      %838 = vst.msk [vmem:[%s223 + $0x90] sm:$0xff] %vm819, %v805
      %839 = vst.msk [vmem:[%s223 + $0x98] sm:$0xff] %vm819, %v806
      %840 = vst.msk [vmem:[%s223 + $0xa0] sm:$0xff] %vm819, %v807
      %841 = vst.msk [vmem:[%s223 + $0xa8] sm:$0xff] %vm819, %v808
      %842 = vst.msk [vmem:[%s223 + $0xb0] sm:$0xff] %vm819, %v809
      %843 = vst.msk [vmem:[%s223 + $0xb8] sm:$0xff] %vm819, %v810
      %844 = vst.msk [vmem:[%s223 + $0xc0] sm:$0xff] %vm819, %v811
      %845 = vst.msk [vmem:[%s223 + $0xc8] sm:$0xff] %vm819, %v812
      %846 = vst.msk [vmem:[%s223 + $0xd0] sm:$0xff] %vm819, %v813
      %847 = vst.msk [vmem:[%s223 + $0xd8] sm:$0xff] %vm819, %v814
      %848 = vst.msk [vmem:[%s223 + $0xe0] sm:$0xff] %vm819, %v815
      %849 = vst.msk [vmem:[%s223 + $0xe8] sm:$0xff] %vm819, %v816
      %850 = vst.msk [vmem:[%s223 + $0xf0] sm:$0xff] %vm819, %v817
      %851 = vst.msk [vmem:[%s223 + $0xf8] sm:$0xff] %vm819, %v818
      %s852 = smul.u32 32, %s18
      %p853 = scmp.lt.s32.totalorder %s852, 63
      %s854 = scalar_select %p853, %s852, 63
      %p855 = scmp.lt.s32.totalorder %s19, 0
      %s856 = scalar_select %p855, %s19, 0
      %s857 = sadd.s32 %s856, %s854
      %s858 = smul.addr %s857, 8
      %s859 = scalar_lea.vmem %s3, %s858
      // Predicated region
      $region33: #{tpu_custom_call.1} parent=31 // pred_check
        %p860 = pneg %p124
      $region34: #{tpu_custom_call.1} parent=31 // pred_check_branch
        %862 = sbr.rel (%p860) target = $region36
      $region35: #{tpu_custom_call.1} parent=31 // pred_region
        %s863 = smul.u32 32, %s18
      $region36: #{tpu_custom_call.1} parent=31 // pred_fallthru
        _
    $region32: #{tpu_custom_call.1} parent=5 // pred_fallthru
      _
    %p864 = scmp.le.s32.totalorder 2, %s9
    // Predicated region
    $region37: #{tpu_custom_call.1} parent=5 // pred_check
      %p865 = pneg %p864
    $region38: #{tpu_custom_call.1} parent=5 // pred_check_branch
      %867 = sbr.rel (%p865) target = $region40
    $region39: #{tpu_custom_call.1} parent=5 // pred_region
      %s868 = ssub.s32 %s9, 2
      // Predicated region
      $region41: #{tpu_custom_call.1} parent=39 // pred_check
        %p869 = pneg %p130
      $region42: #{tpu_custom_call.1} parent=39 // pred_check_branch
        %871 = sbr.rel (%p869) target = $region44
      $region43: #{tpu_custom_call.1} parent=39 // pred_region
        %s872 = smul.u32 32, %s20
        %p873 = scmp.lt.s32.totalorder %s872, 63
        %s874 = scalar_select %p873, %s872, 63
        %p875 = scmp.lt.s32.totalorder %s21, 0
        %s876 = scalar_select %p875, %s21, 0
        %s877 = sadd.s32 %s876, %s874
        %s878 = smul.addr %s877, 8
        %s879 = scalar_lea.vmem %s3, %s878
      $region44: #{tpu_custom_call.1} parent=39 // pred_fallthru
        _
    $region40: #{tpu_custom_call.1} parent=5 // pred_fallthru
      _
  $region6: #{tpu_custom_call.1} parent=0 // loop_footer
    %s13 = sadd.s32 1, %s9
  $region7: #{tpu_custom_call.1} parent=0 // loop_footer_branch
    %8 = sbr.rel target = $region3
  $region8: #{tpu_custom_call.1} parent=0 // loop_exit
    _

</llo_original>
